<compile_context>
chip_gen: v6e
topology: v6e:2x2x1
jax: 0.10.0
libtpu: 0.0.40
codegen_flags: <defaults>
</compile_context>

<pallas_src>
import jax
import jax.numpy as jnp
import numpy as np
from jax.experimental import pallas as pl
from jax.experimental.pallas import tpu as pltpu


# ---------------------------------------------------------------------------
# Kernel
# ---------------------------------------------------------------------------
def _summary_attn_kernel(x_ref, wkv_ref, bkv_ref, qblk_ref, expand_ref,
                         wo_ref, bo_ref, out_ref, m_ref, l_ref, acc_ref):
    s_idx = pl.program_id(1)
    n_s = pl.num_programs(1)

    Sb, Bt, ems = x_ref.shape              # (block_s, block_b, emsize)
    E = wo_ref.shape[0]                    # embed_dim

    # ---- init accumulators at the first sequence step ----
    @pl.when(s_idx == 0)
    def _():
        m_ref[...] = jnp.full(m_ref.shape, -jnp.inf, dtype=m_ref.dtype)
        l_ref[...] = jnp.zeros(l_ref.shape, dtype=l_ref.dtype)
        acc_ref[...] = jnp.zeros(acc_ref.shape, dtype=acc_ref.dtype)

    # ---- fused K|V projection for this sequence block (one lane-dense MXU pass) ----
    xf = x_ref[...].reshape(Sb * Bt, ems)                          # free: Bt % 8 == 0
    kv = jnp.dot(xf, wkv_ref[...], preferred_element_type=jnp.float32) + bkv_ref[...]
    k = kv[:, :E]                                                  # (Sb*Bt, E) lane-aligned
    v = kv[:, E:]                                                  # (Sb*Bt, E)

    # ---- all-head attention scores in one matmul (block-diagonal pre-scaled query) ----
    scores = jnp.dot(k, qblk_ref[...], preferred_element_type=jnp.float32)
    s3 = scores.reshape(Sb, Bt, -1)                                # (Sb, Bt, nhead)

    # ---- online softmax over the sequence axis ----
    m_prev = m_ref[...]                                            # (Bt, nhead)
    m_new = jnp.maximum(m_prev, jnp.max(s3, axis=0))               # (Bt, nhead)
    alpha = jnp.exp(m_prev - m_new)                                # (Bt, nhead)
    p = jnp.exp(s3 - m_new[None, :, :])                            # (Sb, Bt, nhead)
    l_ref[...] = alpha * l_ref[...] + jnp.sum(p, axis=0)

    # expand per-head softmax weights to all E lanes with one matmul against the 0/1
    # (nhead, E) expander, then do the weighted-V partial sum at full lane width.
    w_full = jnp.dot(p.reshape(Sb * Bt, -1), expand_ref[...],
                     preferred_element_type=jnp.float32)           # (Sb*Bt, E)
    partial = jnp.sum((w_full * v).reshape(Sb, Bt, E), axis=0)     # (Bt, E)
    alpha_full = jnp.dot(alpha, expand_ref[...],
                         preferred_element_type=jnp.float32)       # (Bt, E)
    acc_ref[...] = alpha_full * acc_ref[...] + partial
    m_ref[...] = m_new

    # ---- finalize: normalize, output projection, lane-dense store ----
    @pl.when(s_idx == n_s - 1)
    def _():
        inv_l = pl.reciprocal(l_ref[...], approx=False)            # exact; once per tile
        inv_full = jnp.dot(inv_l, expand_ref[...],
                           preferred_element_type=jnp.float32)     # (Bt, E)
        attn = acc_ref[...] * inv_full
        out_ref[...] = (jnp.dot(attn, wo_ref[...],
                                preferred_element_type=jnp.float32)
                        + bo_ref[...]).astype(out_ref.dtype)


# ---------------------------------------------------------------------------
# Tiling / VMEM-budget helpers
# ---------------------------------------------------------------------------
def _vmem_limit_bytes():
    try:
        phys = pltpu.get_tpu_info().vmem_capacity_bytes
    except Exception:
        phys = 64 * 1024 * 1024            # conservative (v7x-sized); fine on v5e/v6e too
    # ~48 MiB on v7x (64 MiB physical), ~96 MiB on v5e/v6e (128 MiB physical)
    return int(phys * 3 // 4)


def _largest_divisor_leq(n, limit, multiple_of=1):
    """Largest divisor of n that is <= limit and a multiple of `multiple_of` (0 if none)."""
    limit = min(limit, n)
    d = limit - (limit % multiple_of)
    while d >= multiple_of:
        if n % d == 0:
            return d
        d -= multiple_of
    return 0


def _auto_tiles(S, B, ems, E, nhead, x_bytes, vmem_limit_bytes):
    # Grid-invariant VMEM: weights/constants (Pallas double-buffers them) + biases.
    fixed = 2 * (ems * 2 * E * x_bytes + E * E * 4
                 + (2 * E + E + nhead * E + E * nhead) * 4)
    budget = max(vmem_limit_bytes - fixed - (2 << 20), vmem_limit_bytes // 4)

    # Per (s, b) element: double-buffered x tile + f32 kv / w_full intermediates.
    per_elem = 2 * ems * x_bytes + (2 * E + E) * 4 + 64
    # Per batch row: acc scratch + double-buffered f32 output tile.
    per_row = (E + 2 * E) * 4

    # Sequence tile: big enough to amortize the ~0.35 us per-grid-step overhead.
    block_s = _largest_divisor_leq(S, 256) or S
    while block_s > 1 and budget < (per_elem * block_s + per_row) * 8:
        smaller = _largest_divisor_leq(S, block_s // 2)
        if smaller in (0, block_s):
            break
        block_s = smaller

    max_rows = max(8, budget // (per_elem * block_s + per_row))
    # Keep >= 2 batch grid steps: pipeline overlap + both v7x TensorCores busy.
    if B >= 16 and B % 8 == 0:
        cap = (B // 2) - ((B // 2) % 8)
    else:
        cap = B
    target = min(int(max_rows), cap, 1024)
    block_b = _largest_divisor_leq(B, target, 8) or B   # fallback: unaligned B -> single tile
    return block_b, block_s


# ---------------------------------------------------------------------------
# Parameter preparation (hoisted, cached host-side constants)
# ---------------------------------------------------------------------------
def prepare_summary_attention_params(params, *, nhead, compute_dtype=jnp.float32):
    """Build kernel-side constants once per parameter set (data-independent work hoisted)."""
    E = params["WoT"].shape[0]
    assert E % nhead == 0
    dh = E // nhead

    # Data-independent query projection.
    q = (params["query"] @ params["WqT"] + params["bq"]).reshape(E)          # (E,)
    head_of_col = np.arange(E) // dh
    onehot = (head_of_col[:, None] == np.arange(nhead)[None, :]).astype(np.float32)
    qblk = jnp.asarray(onehot) * (q[:, None] * (1.0 / float(np.sqrt(dh))))   # (E, nhead)
    expand = jnp.asarray(onehot.T)                                           # (nhead, E)

    # Fused K|V projection weights/bias -> one lane-dense 2E-wide matmul in the kernel.
    wkv = jnp.concatenate([params["WkT"], params["WvT"]], axis=1).astype(compute_dtype)
    bkv = jnp.concatenate([params["bk"], params["bv"]], axis=1).astype(jnp.float32)

    return dict(
        wkv=wkv, bkv=bkv,
        qblk=qblk.astype(jnp.float32), expand=expand.astype(jnp.float32),
        WoT=params["WoT"].astype(jnp.float32), bo=params["bo"].astype(jnp.float32),
        nhead=nhead, compute_dtype=compute_dtype,
    )


# ---------------------------------------------------------------------------
# Forward wrapper
# ---------------------------------------------------------------------------
def summary_layer_forward(x, y_src, prepared, *, block_b=None, block_s=None):
    """decoder_type='output_attention' forward. x: (S, B, emsize) or (S, B1, B2, emsize)."""
    del y_src  # unused on the output_attention path
    orig_ndim = x.ndim
    if x.ndim == 4:
        S4, B1, B2, e4 = x.shape
        x = x.reshape(S4, B1 * B2, e4)
    S, B, ems = x.shape
    E = prepared["WoT"].shape[0]
    nhead = prepared["nhead"]
    cdtype = prepared["compute_dtype"]
    x_bytes = jnp.dtype(cdtype).itemsize

    vmem_limit = _vmem_limit_bytes()
    auto_bb, auto_bs = _auto_tiles(S, B, ems, E, nhead, x_bytes, vmem_limit)
    if block_b is None:
        block_b = auto_bb
    if block_s is None:
        block_s = auto_bs
    assert B % block_b == 0, "batch must be divisible by the batch tile"
    assert S % block_s == 0, "sequence must be divisible by the sequence tile"

    x = x.astype(cdtype)   # bf16 halves the dominant HBM stream; softmax stays f32 in-kernel

    grid = (B // block_b, S // block_s)   # batch parallel, sequence (reduction) last
    res = pl.pallas_call(
        _summary_attn_kernel,
        out_shape=jax.ShapeDtypeStruct((B, E), jnp.float32),
        grid=grid,
        in_specs=[
            pl.BlockSpec((block_s, block_b, ems), lambda b, s: (s, b, 0)),  # x tile
            pl.BlockSpec((ems, 2 * E), lambda b, s: (0, 0)),                # [Wk|Wv]
            pl.BlockSpec((1, 2 * E), lambda b, s: (0, 0)),                  # [bk|bv]
            pl.BlockSpec((E, nhead), lambda b, s: (0, 0)),                  # block-diag scaled q
            pl.BlockSpec((nhead, E), lambda b, s: (0, 0)),                  # head->lane expander
            pl.BlockSpec((E, E), lambda b, s: (0, 0)),                      # Wo
            pl.BlockSpec((1, E), lambda b, s: (0, 0)),                      # bo
        ],
        out_specs=pl.BlockSpec((block_b, E), lambda b, s: (b, 0)),
        scratch_shapes=[
            pltpu.VMEM((block_b, nhead), jnp.float32),   # running max  m
            pltpu.VMEM((block_b, nhead), jnp.float32),   # running denom l
            pltpu.VMEM((block_b, E), jnp.float32),       # running weighted-V accumulator
        ],
        compiler_params=pltpu.CompilerParams(
            dimension_semantics=("parallel", "arbitrary"),
            vmem_limit_bytes=vmem_limit,
        ),
    )(x, prepared["wkv"], prepared["bkv"], prepared["qblk"],
      prepared["expand"], prepared["WoT"], prepared["bo"])

    if orig_ndim == 4:
        res = res.reshape(B1, B2, E)
    return res


# ---------------------------------------------------------------------------
# Pure-JAX reference (PyTorch nn.MultiheadAttention math, kdim=vdim=emsize)
# ---------------------------------------------------------------------------
def reference_forward(x, params, *, nhead):
    S, B, ems = x.shape
    E = params["WoT"].shape[0]
    dh = E // nhead
    q = params["query"] @ params["WqT"] + params["bq"]                        # (1, E)
    k = (x.reshape(S * B, ems) @ params["WkT"] + params["bk"]).reshape(S, B, nhead, dh)
    v = (x.reshape(S * B, ems) @ params["WvT"] + params["bv"]).reshape(S, B, nhead, dh)
    qh = q.reshape(nhead, dh)
    scores = jnp.einsum("sbhd,hd->sbh", k, qh) / float(np.sqrt(dh))
    w = jax.nn.softmax(scores, axis=0)
    attn = jnp.einsum("sbh,sbhd->bhd", w, v).reshape(B, E)
    return attn @ params["WoT"] + params["bo"]


if __name__ == "__main__":
    # Small config consistent with the module (emsize-keyed attention into embed_dim, 4 heads).
    S, B = 16, 32
    emsize, embed_dim, nhead = 64, 128, 4

    key = jax.random.PRNGKey(0)
    keys = jax.random.split(key, 11)

    def init(k, shape, fan_in):
        return (jax.random.normal(k, shape, jnp.float32) / np.sqrt(fan_in)).astype(jnp.float32)

    # Shapes follow nn.MultiheadAttention(embed_dim, nhead, kdim=vdim=emsize);
    # weights stored pre-transposed (in, out) so matmuls feed the MXU directly.
    params = {
        "query": jax.random.normal(keys[0], (1, embed_dim), jnp.float32),  # nn.Parameter (1,1,E)
        "WqT": init(keys[1], (embed_dim, embed_dim), embed_dim),           # q_proj_weight.T
        "bq": init(keys[2], (1, embed_dim), embed_dim),
        "WkT": init(keys[3], (emsize, embed_dim), emsize),                 # k_proj_weight.T
        "bk": init(keys[4], (1, embed_dim), emsize),
        "WvT": init(keys[5], (emsize, embed_dim), emsize),                 # v_proj_weight.T
        "bv": init(keys[6], (1, embed_dim), emsize),
        "WoT": init(keys[7], (embed_dim, embed_dim), embed_dim),           # out_proj.weight.T
        "bo": init(keys[8], (1, embed_dim), embed_dim),
    }

    x = jax.random.normal(keys[9], (S, B, emsize), jnp.float32)
    y_src = jax.random.randint(keys[10], (S, B), 0, 10)   # unused on this path

    res_ref = reference_forward(x, params, nhead=nhead)
    jax.block_until_ready(res_ref)

    # 1) f32 end-to-end, explicit small tiles -> grid (4, 2): exercises the online-softmax
    #    accumulator carrying state across multiple sequence steps.
    prep_f32 = prepare_summary_attention_params(params, nhead=nhead, compute_dtype=jnp.float32)
    res_f32 = summary_layer_forward(x, y_src, prep_f32, block_b=8, block_s=8)
    jax.block_until_ready(res_f32)
    assert res_f32.shape == (B, embed_dim)
    np.testing.assert_allclose(np.asarray(res_f32), np.asarray(res_ref), rtol=1e-2, atol=1e-2)

    # 2) bf16 MXU operands (x + fused K|V weight), auto VMEM-budgeted tiles.
    prep_bf16 = prepare_summary_attention_params(params, nhead=nhead, compute_dtype=jnp.bfloat16)
    res_bf16 = summary_layer_forward(x, y_src, prep_bf16)
    jax.block_until_ready(res_bf16)
    np.testing.assert_allclose(np.asarray(res_bf16), np.asarray(res_ref), rtol=5e-2, atol=5e-2)

    print("KERNEL_OK")
</pallas_src>

<mosaic_0001>
module attributes {stable_mosaic.version = 11 : i64} {
  func.func @_summary_attn_kernel(%arg0: i32, %arg1: i32, %arg2: memref<8x8x64xf32, #tpu.memory_space<vmem>>, %arg3: memref<64x256xf32, #tpu.memory_space<vmem>>, %arg4: memref<1x256xf32, #tpu.memory_space<vmem>>, %arg5: memref<128x4xf32, #tpu.memory_space<vmem>>, %arg6: memref<4x128xf32, #tpu.memory_space<vmem>>, %arg7: memref<128x128xf32, #tpu.memory_space<vmem>>, %arg8: memref<1x128xf32, #tpu.memory_space<vmem>>, %arg9: memref<8x128xf32, #tpu.memory_space<vmem>>, %arg10: memref<8x4xf32, #tpu.memory_space<vmem>>, %arg11: memref<8x4xf32, #tpu.memory_space<vmem>>, %arg12: memref<8x128xf32, #tpu.memory_space<vmem>>) attributes {dimension_semantics = [#tpu.dimension_semantics<parallel>, #tpu.dimension_semantics<arbitrary>], iteration_bounds = array<i64: 4, 2>, scalar_prefetch = 0 : i64, scratch_operands = 3 : i64, tpu.core_type = #tpu.core_type<tc>, window_params = [{transform_indices = @transform_0, window_bounds = array<i64: 8, 8, 64>}, {pipeline_mode = #tpu.pipeline_mode<synchronous>, transform_indices = @transform_1, window_bounds = array<i64: 64, 256>}, {pipeline_mode = #tpu.pipeline_mode<synchronous>, transform_indices = @transform_2, window_bounds = array<i64: 1, 256>}, {pipeline_mode = #tpu.pipeline_mode<synchronous>, transform_indices = @transform_3, window_bounds = array<i64: 128, 4>}, {pipeline_mode = #tpu.pipeline_mode<synchronous>, transform_indices = @transform_4, window_bounds = array<i64: 4, 128>}, {pipeline_mode = #tpu.pipeline_mode<synchronous>, transform_indices = @transform_5, window_bounds = array<i64: 128, 128>}, {pipeline_mode = #tpu.pipeline_mode<synchronous>, transform_indices = @transform_6, window_bounds = array<i64: 1, 128>}, {transform_indices = @transform_7, window_bounds = array<i64: 8, 128>}]} {
    %c0_i32 = arith.constant 0 : i32
    %0 = arith.cmpi eq, %arg1, %c0_i32 : i32
    %1 = arith.extui %0 : i1 to i32
    %c0_i32_0 = arith.constant 0 : i32
    %2 = arith.cmpi ne, %1, %c0_i32_0 : i32
    scf.if %2 {
      %cst_32 = arith.constant 0xFF800000 : f32
      %45 = vector.broadcast %cst_32 : f32 to vector<8x4xf32>
      %c0_33 = arith.constant 0 : index
      %c0_34 = arith.constant 0 : index
      %46 = vector.load %arg10[%c0_33, %c0_34] : memref<8x4xf32, #tpu.memory_space<vmem>>, vector<8x4xf32>
      tpu.vector_store %arg10[%c0_33, %c0_34], %45 {strides = array<i32>} : memref<8x4xf32, #tpu.memory_space<vmem>>, vector<8x4xf32>,
      %cst_35 = arith.constant 0.000000e+00 : f32
      %47 = vector.broadcast %cst_35 : f32 to vector<8x4xf32>
      %c0_36 = arith.constant 0 : index
      %c0_37 = arith.constant 0 : index
      %48 = vector.load %arg11[%c0_36, %c0_37] : memref<8x4xf32, #tpu.memory_space<vmem>>, vector<8x4xf32>
      tpu.vector_store %arg11[%c0_36, %c0_37], %47 {strides = array<i32>} : memref<8x4xf32, #tpu.memory_space<vmem>>, vector<8x4xf32>,
      %cst_38 = arith.constant 0.000000e+00 : f32
      %49 = vector.broadcast %cst_38 : f32 to vector<8x128xf32>
      %c0_39 = arith.constant 0 : index
      %c0_40 = arith.constant 0 : index
      %50 = vector.load %arg12[%c0_39, %c0_40] : memref<8x128xf32, #tpu.memory_space<vmem>>, vector<8x128xf32>
      tpu.vector_store %arg12[%c0_39, %c0_40], %49 {strides = array<i32>} : memref<8x128xf32, #tpu.memory_space<vmem>>, vector<8x128xf32>,
    } else {
    }
    %c0 = arith.constant 0 : index
    %c0_1 = arith.constant 0 : index
    %c0_2 = arith.constant 0 : index
    %3 = vector.load %arg2[%c0, %c0_1, %c0_2] : memref<8x8x64xf32, #tpu.memory_space<vmem>>, vector<8x8x64xf32>
    %4 = vector.shape_cast %3 : vector<8x8x64xf32> to vector<64x64xf32>
    %c0_3 = arith.constant 0 : index
    %c0_4 = arith.constant 0 : index
    %5 = vector.load %arg3[%c0_3, %c0_4] : memref<64x256xf32, #tpu.memory_space<vmem>>, vector<64x256xf32>
    %cst = arith.constant dense<0.000000e+00> : vector<64x256xf32>
    %6 = tpu.matmul %4, %5, %cst {dimension_numbers = #tpu.dot_dimension_numbers<[1], [0], [0], [1], [0, 0, 1, 1], [], []>} : vector<64x64xf32>, vector<64x256xf32>, vector<64x256xf32> -> vector<64x256xf32>
    %c0_5 = arith.constant 0 : index
    %c0_6 = arith.constant 0 : index
    %7 = vector.load %arg4[%c0_5, %c0_6] : memref<1x256xf32, #tpu.memory_space<vmem>>, vector<1x256xf32>
    %8 = vector.broadcast %7 : vector<1x256xf32> to vector<64x256xf32>
    %9 = arith.addf %6, %8 : vector<64x256xf32>
    %10 = vector.extract_strided_slice %9 {offsets = [0, 0], sizes = [64, 128], strides = [1, 1]} : vector<64x256xf32> to vector<64x128xf32>
    %11 = vector.extract_strided_slice %9 {offsets = [0, 128], sizes = [64, 128], strides = [1, 1]} : vector<64x256xf32> to vector<64x128xf32>
    %c0_7 = arith.constant 0 : index
    %c0_8 = arith.constant 0 : index
    %12 = vector.load %arg5[%c0_7, %c0_8] : memref<128x4xf32, #tpu.memory_space<vmem>>, vector<128x4xf32>
    %cst_9 = arith.constant dense<0.000000e+00> : vector<64x4xf32>
    %13 = tpu.matmul %10, %12, %cst_9 {dimension_numbers = #tpu.dot_dimension_numbers<[1], [0], [0], [1], [0, 0, 1, 1], [], []>} : vector<64x128xf32>, vector<128x4xf32>, vector<64x4xf32> -> vector<64x4xf32>
    %14 = vector.shape_cast %13 : vector<64x4xf32> to vector<8x8x4xf32>
    %c0_10 = arith.constant 0 : index
    %c0_11 = arith.constant 0 : index
    %15 = vector.load %arg10[%c0_10, %c0_11] : memref<8x4xf32, #tpu.memory_space<vmem>>, vector<8x4xf32>
    %cst_12 = arith.constant dense<0xFF800000> : vector<8x4xf32>
    %16 = vector.multi_reduction <maximumf>, %14, %cst_12 [0] : vector<8x8x4xf32> to vector<8x4xf32>
    %17 = arith.maximumf %15, %16 : vector<8x4xf32>
    %18 = arith.subf %15, %17 : vector<8x4xf32>
    %19 = math.exp %18 : vector<8x4xf32>
    %20 = vector.shape_cast %17 : vector<8x4xf32> to vector<1x8x4xf32>
    %21 = vector.broadcast %20 : vector<1x8x4xf32> to vector<8x8x4xf32>
    %22 = arith.subf %14, %21 : vector<8x8x4xf32>
    %23 = math.exp %22 : vector<8x8x4xf32>
    %c0_13 = arith.constant 0 : index
    %c0_14 = arith.constant 0 : index
    %24 = vector.load %arg11[%c0_13, %c0_14] : memref<8x4xf32, #tpu.memory_space<vmem>>, vector<8x4xf32>
    %25 = arith.mulf %19, %24 : vector<8x4xf32>
    %cst_15 = arith.constant dense<0.000000e+00> : vector<8x4xf32>
    %26 = vector.multi_reduction <add>, %23, %cst_15 [0] : vector<8x8x4xf32> to vector<8x4xf32>
    %27 = arith.addf %25, %26 : vector<8x4xf32>
    %c0_16 = arith.constant 0 : index
    %c0_17 = arith.constant 0 : index
    %28 = vector.load %arg11[%c0_16, %c0_17] : memref<8x4xf32, #tpu.memory_space<vmem>>, vector<8x4xf32>
    tpu.vector_store %arg11[%c0_16, %c0_17], %27 {strides = array<i32>} : memref<8x4xf32, #tpu.memory_space<vmem>>, vector<8x4xf32>,
    %29 = vector.shape_cast %23 : vector<8x8x4xf32> to vector<64x4xf32>
    %c0_18 = arith.constant 0 : index
    %c0_19 = arith.constant 0 : index
    %30 = vector.load %arg6[%c0_18, %c0_19] : memref<4x128xf32, #tpu.memory_space<vmem>>, vector<4x128xf32>
    %cst_20 = arith.constant dense<0.000000e+00> : vector<64x128xf32>
    %31 = tpu.matmul %29, %30, %cst_20 {dimension_numbers = #tpu.dot_dimension_numbers<[1], [0], [0], [1], [0, 0, 1, 1], [], []>} : vector<64x4xf32>, vector<4x128xf32>, vector<64x128xf32> -> vector<64x128xf32>
    %32 = arith.mulf %31, %11 : vector<64x128xf32>
    %33 = vector.shape_cast %32 : vector<64x128xf32> to vector<8x8x128xf32>
    %cst_21 = arith.constant dense<0.000000e+00> : vector<8x128xf32>
    %34 = vector.multi_reduction <add>, %33, %cst_21 [0] : vector<8x8x128xf32> to vector<8x128xf32>
    %c0_22 = arith.constant 0 : index
    %c0_23 = arith.constant 0 : index
    %35 = vector.load %arg6[%c0_22, %c0_23] : memref<4x128xf32, #tpu.memory_space<vmem>>, vector<4x128xf32>
    %cst_24 = arith.constant dense<0.000000e+00> : vector<8x128xf32>
    %36 = tpu.matmul %19, %35, %cst_24 {dimension_numbers = #tpu.dot_dimension_numbers<[1], [0], [0], [1], [0, 0, 1, 1], [], []>} : vector<8x4xf32>, vector<4x128xf32>, vector<8x128xf32> -> vector<8x128xf32>
    %c0_25 = arith.constant 0 : index
    %c0_26 = arith.constant 0 : index
    %37 = vector.load %arg12[%c0_25, %c0_26] : memref<8x128xf32, #tpu.memory_space<vmem>>, vector<8x128xf32>
    %38 = arith.mulf %36, %37 : vector<8x128xf32>
    %39 = arith.addf %38, %34 : vector<8x128xf32>
    %c0_27 = arith.constant 0 : index
    %c0_28 = arith.constant 0 : index
    %40 = vector.load %arg12[%c0_27, %c0_28] : memref<8x128xf32, #tpu.memory_space<vmem>>, vector<8x128xf32>
    tpu.vector_store %arg12[%c0_27, %c0_28], %39 {strides = array<i32>} : memref<8x128xf32, #tpu.memory_space<vmem>>, vector<8x128xf32>,
    %c0_29 = arith.constant 0 : index
    %c0_30 = arith.constant 0 : index
    %41 = vector.load %arg10[%c0_29, %c0_30] : memref<8x4xf32, #tpu.memory_space<vmem>>, vector<8x4xf32>
    tpu.vector_store %arg10[%c0_29, %c0_30], %17 {strides = array<i32>} : memref<8x4xf32, #tpu.memory_space<vmem>>, vector<8x4xf32>,
    %c1_i32 = arith.constant 1 : i32
    %42 = arith.cmpi eq, %arg1, %c1_i32 : i32
    %43 = arith.extui %42 : i1 to i32
    %c0_i32_31 = arith.constant 0 : i32
    %44 = arith.cmpi ne, %43, %c0_i32_31 : i32
    scf.if %44 {
      %c0_32 = arith.constant 0 : index
      %c0_33 = arith.constant 0 : index
      %45 = vector.load %arg11[%c0_32, %c0_33] : memref<8x4xf32, #tpu.memory_space<vmem>>, vector<8x4xf32>
      %46 = tpu.reciprocal %45 : vector<8x4xf32> -> vector<8x4xf32>
      %c0_34 = arith.constant 0 : index
      %c0_35 = arith.constant 0 : index
      %47 = vector.load %arg6[%c0_34, %c0_35] : memref<4x128xf32, #tpu.memory_space<vmem>>, vector<4x128xf32>
      %cst_36 = arith.constant dense<0.000000e+00> : vector<8x128xf32>
      %48 = tpu.matmul %46, %47, %cst_36 {dimension_numbers = #tpu.dot_dimension_numbers<[1], [0], [0], [1], [0, 0, 1, 1], [], []>} : vector<8x4xf32>, vector<4x128xf32>, vector<8x128xf32> -> vector<8x128xf32>
      %c0_37 = arith.constant 0 : index
      %c0_38 = arith.constant 0 : index
      %49 = vector.load %arg12[%c0_37, %c0_38] : memref<8x128xf32, #tpu.memory_space<vmem>>, vector<8x128xf32>
      %50 = arith.mulf %49, %48 : vector<8x128xf32>
      %c0_39 = arith.constant 0 : index
      %c0_40 = arith.constant 0 : index
      %51 = vector.load %arg7[%c0_39, %c0_40] : memref<128x128xf32, #tpu.memory_space<vmem>>, vector<128x128xf32>
      %cst_41 = arith.constant dense<0.000000e+00> : vector<8x128xf32>
      %52 = tpu.matmul %50, %51, %cst_41 {dimension_numbers = #tpu.dot_dimension_numbers<[1], [0], [0], [1], [0, 0, 1, 1], [], []>} : vector<8x128xf32>, vector<128x128xf32>, vector<8x128xf32> -> vector<8x128xf32>
      %c0_42 = arith.constant 0 : index
      %c0_43 = arith.constant 0 : index
      %53 = vector.load %arg8[%c0_42, %c0_43] : memref<1x128xf32, #tpu.memory_space<vmem>>, vector<1x128xf32>
      %54 = vector.broadcast %53 : vector<1x128xf32> to vector<8x128xf32>
      %55 = arith.addf %52, %54 : vector<8x128xf32>
      %c0_44 = arith.constant 0 : index
      %c0_45 = arith.constant 0 : index
      %56 = vector.load %arg9[%c0_44, %c0_45] : memref<8x128xf32, #tpu.memory_space<vmem>>, vector<8x128xf32>
      tpu.vector_store %arg9[%c0_44, %c0_45], %55 {strides = array<i32>} : memref<8x128xf32, #tpu.memory_space<vmem>>, vector<8x128xf32>,
    } else {
    }
    return
  }
  func.func @transform_0(%arg0: i32, %arg1: i32) -> (i32, i32, i32) {
    %c0_i32 = arith.constant 0 : i32
    %c0_i32_0 = arith.constant 0 : i32
    return %arg1, %arg0, %c0_i32 : i32, i32, i32
  }
  func.func @transform_1(%arg0: i32, %arg1: i32) -> (i32, i32) {
    %c0_i32 = arith.constant 0 : i32
    %c0_i32_0 = arith.constant 0 : i32
    %c0_i32_1 = arith.constant 0 : i32
    return %c0_i32, %c0_i32_0 : i32, i32
  }
  func.func @transform_2(%arg0: i32, %arg1: i32) -> (i32, i32) {
    %c0_i32 = arith.constant 0 : i32
    %c0_i32_0 = arith.constant 0 : i32
    %c0_i32_1 = arith.constant 0 : i32
    return %c0_i32, %c0_i32_0 : i32, i32
  }
  func.func @transform_3(%arg0: i32, %arg1: i32) -> (i32, i32) {
    %c0_i32 = arith.constant 0 : i32
    %c0_i32_0 = arith.constant 0 : i32
    %c0_i32_1 = arith.constant 0 : i32
    return %c0_i32, %c0_i32_0 : i32, i32
  }
  func.func @transform_4(%arg0: i32, %arg1: i32) -> (i32, i32) {
    %c0_i32 = arith.constant 0 : i32
    %c0_i32_0 = arith.constant 0 : i32
    %c0_i32_1 = arith.constant 0 : i32
    return %c0_i32, %c0_i32_0 : i32, i32
  }
  func.func @transform_5(%arg0: i32, %arg1: i32) -> (i32, i32) {
    %c0_i32 = arith.constant 0 : i32
    %c0_i32_0 = arith.constant 0 : i32
    %c0_i32_1 = arith.constant 0 : i32
    return %c0_i32, %c0_i32_0 : i32, i32
  }
  func.func @transform_6(%arg0: i32, %arg1: i32) -> (i32, i32) {
    %c0_i32 = arith.constant 0 : i32
    %c0_i32_0 = arith.constant 0 : i32
    %c0_i32_1 = arith.constant 0 : i32
    return %c0_i32, %c0_i32_0 : i32, i32
  }
  func.func @transform_7(%arg0: i32, %arg1: i32) -> (i32, i32) {
    %c0_i32 = arith.constant 0 : i32
    %c0_i32_0 = arith.constant 0 : i32
    return %arg0, %c0_i32 : i32, i32
  }
}

</mosaic_0001>

<llo_original>
// kernel: tpu_custom_call.1
$region0: #{tpu_custom_call.1}
  #allocation0 [shape = 'u32[]', space=smem, size = 0x4, offset = 0x4, fixed_abs, tag = 'smem constant byte address 0x4 - core index']
  #allocation1 [shape = 'u32[144,128]{1,0:T(1,128)}', space=vmem, size = 0x12000, scoped, tag = 'internal scratch']
  #allocation2 [shape = 'f32[8,4]{1,0:T(8,128)}', space=vmem, size = 0x1000, scoped, tag = 'scratch operand']
  #allocation3 [shape = 'f32[8,4]{1,0:T(8,128)}', space=vmem, size = 0x1000, scoped, tag = 'scratch operand']
  #allocation4 [shape = 'f32[8,128]{1,0:T(8,128)}', space=vmem, size = 0x1000, scoped, tag = 'scratch operand']
  %s0 = inlined_call_operand.hbm [shape: f32[16,32,64], index: 0, kind: input, shape index: {}]
  %s1 = inlined_call_operand.vmem [shape: f32[64,256], index: 1, kind: input, shape index: {}]
  %s2 = inlined_call_operand.hbm [shape: f32[1,256], index: 2, kind: input, shape index: {}]
  %s3 = inlined_call_operand.vmem [shape: f32[128,4], index: 3, kind: input, shape index: {}]
  %s4 = inlined_call_operand.vmem [shape: f32[4,128], index: 4, kind: input, shape index: {}]
  %s5 = inlined_call_operand.hbm [shape: f32[128,128], index: 5, kind: input, shape index: {}]
  %s6 = inlined_call_operand.vmem [shape: f32[1,128], index: 6, kind: input, shape index: {}]
  %s7 = inlined_call_operand.hbm [shape: f32[32,128], index: 7, kind: output, shape index: {}]
  %s8 = sld [smem:[#allocation0]]
  $region81: #{tpu_custom_call.1} parent=0
    _
  %s10 = ssub.s32 1, %s8
  %s11 = scalar_select 0, %s10, %s8
  $region1: #{tpu_custom_call.1} parent=0
    #allocation5 [shape = 'u8[65536]{0}', space=vmem, size = 0x10000, scoped, tag = 'input window, operand 0']
    #allocation6 [shape = 's32[2]{0}', space=sflag, size = 0x8, scoped, tag = 'scoped memory for tpu_custom_call.1']
    #allocation7 [shape = 's32[2]{0}', space=sflag, size = 0x8, scoped, tag = 'scoped memory for tpu_custom_call.1']
    #allocation8 [shape = 'u8[1024]{0}', space=vmem, size = 0x400, scoped, tag = 'input window, operand 2, single buffered']
    #allocation9 [shape = 's32[1]{0}', space=sflag, size = 0x4, scoped, tag = 'scoped memory for tpu_custom_call.1']
    #allocation10 [shape = 'u8[65536]{0}', space=vmem, size = 0x10000, scoped, tag = 'input window, operand 5, single buffered']
    #allocation11 [shape = 'u8[8192]{0}', space=vmem, size = 0x2000, scoped, tag = 'output window, operand 0']
    %12 = vsyncpa [#allocation6], 0
    %s13 = scalar_lea.sflag [#allocation6], 1
    %14 = vsyncpa %s13, 0
    %15 = vsyncpa [#allocation9], 0
    %16 = vsyncpa [#allocation7], 0
    %s17 = scalar_lea.sflag [#allocation7], 1
    %18 = vsyncpa %s17, 0
    loop: start=0, step=1, limit=10
    $region2: #{tpu_custom_call.1} parent=1 // loop_pre_header
      _
    $region3: #{tpu_custom_call.1} parent=1 // loop_header
      %s20 = sphi 0, %s24
      %p21 = scmp.ge.s32.totalorder %s20, 10
      %s27 = sphi 0, %s39
      %s28 = sphi 0, %s35
      %s29 = sphi 0, %s27
      %s30 = sphi 0, %s28
      %s31 = sphi 0, %s29
      %s32 = sphi 0, %s30
      %s44 = sphi 0, %s46
      %s47 = sphi 0, %s44
      %s48 = sphi 0, %s47
      %s64 = sphi 0, %s48
      %s68 = sphi 0, %s68
      %s70 = sphi 0, %s68
      %s71 = sphi 0, %s70
      %s85 = sphi 0, %s71
      %s89 = sphi 0, %s89
      %s91 = sphi 0, %s89
      %s92 = sphi 0, %s91
      %s106 = sphi 0, %s92
      %s110 = sphi 0, %s110
      %s112 = sphi 0, %s110
      %s113 = sphi 0, %s112
      %s127 = sphi 0, %s113
      %s131 = sphi 0, %s131
      %s133 = sphi 0, %s131
      %s134 = sphi 0, %s133
      %s148 = sphi 0, %s134
      %s152 = sphi 0, %s152
      %s154 = sphi 0, %s152
      %s155 = sphi 0, %s154
      %s169 = sphi 0, %s155
      %s173 = sphi 0, %s173
      %s175 = sphi 0, %s173
      %s176 = sphi 0, %s175
      %s190 = sphi 0, %s176
      %s196 = sphi 0, %s198
      %s199 = sphi 0, %s196
      %s200 = sphi 0, %s199
      %s216 = sphi 0, %s200
    $region4: #{tpu_custom_call.1} parent=1 // loop_header_branch
      %23 = sbr.rel (%p21) target = $region8
    $region5: #{tpu_custom_call.1} parent=1 // loop_body
      %s25 = ssub.s32 %s20, 1
      %s26 = ssub.s32 %s20, 2
      %s33 = sadd.s32 1, %s28
      %p34 = scmp.ge.s32.totalorder %s33, 2
      %s35 = scalar_select %p34, 0, %s33
      %s36 = sadd.s32 1, %s27
      %s37 = scalar_select %p34, %s36, %s27
      %p38 = scmp.ge.s32.totalorder %s37, 4
      %s39 = scalar_select %p38, 0, %s37
      %s40 = ssub.s32 %s28, %s35
      %s41 = ssub.s32 %s27, %s39
      %s42 = sor.u32 %s40, %s41
      %p43 = scmp.eq.s32.totalorder %s42, 0
      %s45 = sadd.s32 %s44, 1
      %s46 = scalar_select %p43, %s44, %s45
      %p49 = pneg %p43
      %p50 = scmp.eq.s32.totalorder %s20, 7
      %p51 = por %p49, %p50
      %p52 = scmp.ne.s32.totalorder %s44, %s47
      %p53 = scmp.eq.s32.totalorder %s20, 0
      %p54 = por %p52, %p53
      %p55 = scmp.ne.s32.totalorder %s44, %s47
      %p56 = scmp.eq.s32.totalorder %s25, 7
      %p57 = por %p55, %p56
      %p58 = scmp.ne.s32.totalorder %s47, %s48
      %p59 = scmp.eq.s32.totalorder %s25, 0
      %p60 = por %p58, %p59
      %p61 = scmp.ne.s32.totalorder %s47, %s48
      %p62 = scmp.eq.s32.totalorder %s26, 7
      %p63 = por %p61, %p62
      %p65 = scmp.ne.s32.totalorder %s48, %s64
      %p66 = scmp.eq.s32.totalorder %s26, 0
      %p67 = por %p65, %p66
      %s69 = sadd.s32 %s68, 1
      %p72 = scmp.eq.s32.totalorder %s20, 7
      %p73 = scmp.ne.s32.totalorder %s68, %s70
      %p74 = scmp.eq.s32.totalorder %s20, 0
      %p75 = por %p73, %p74
      %p76 = scmp.ne.s32.totalorder %s68, %s70
      %p77 = scmp.eq.s32.totalorder %s25, 7
      %p78 = por %p76, %p77
      %p79 = scmp.ne.s32.totalorder %s70, %s71
      %p80 = scmp.eq.s32.totalorder %s25, 0
      %p81 = por %p79, %p80
      %p82 = scmp.ne.s32.totalorder %s70, %s71
      %p83 = scmp.eq.s32.totalorder %s26, 7
      %p84 = por %p82, %p83
      %p86 = scmp.ne.s32.totalorder %s71, %s85
      %p87 = scmp.eq.s32.totalorder %s26, 0
      %p88 = por %p86, %p87
      %s90 = sadd.s32 %s89, 1
      %p93 = scmp.eq.s32.totalorder %s20, 7
      %p94 = scmp.ne.s32.totalorder %s89, %s91
      %p95 = scmp.eq.s32.totalorder %s20, 0
      %p96 = por %p94, %p95
      %p97 = scmp.ne.s32.totalorder %s89, %s91
      %p98 = scmp.eq.s32.totalorder %s25, 7
      %p99 = por %p97, %p98
      %p100 = scmp.ne.s32.totalorder %s91, %s92
      %p101 = scmp.eq.s32.totalorder %s25, 0
      %p102 = por %p100, %p101
      %p103 = scmp.ne.s32.totalorder %s91, %s92
      %p104 = scmp.eq.s32.totalorder %s26, 7
      %p105 = por %p103, %p104
      %p107 = scmp.ne.s32.totalorder %s92, %s106
      %p108 = scmp.eq.s32.totalorder %s26, 0
      %p109 = por %p107, %p108
      %s111 = sadd.s32 %s110, 1
      %p114 = scmp.eq.s32.totalorder %s20, 7
      %p115 = scmp.ne.s32.totalorder %s110, %s112
      %p116 = scmp.eq.s32.totalorder %s20, 0
      %p117 = por %p115, %p116
      %p118 = scmp.ne.s32.totalorder %s110, %s112
      %p119 = scmp.eq.s32.totalorder %s25, 7
      %p120 = por %p118, %p119
      %p121 = scmp.ne.s32.totalorder %s112, %s113
      %p122 = scmp.eq.s32.totalorder %s25, 0
      %p123 = por %p121, %p122
      %p124 = scmp.ne.s32.totalorder %s112, %s113
      %p125 = scmp.eq.s32.totalorder %s26, 7
      %p126 = por %p124, %p125
      %p128 = scmp.ne.s32.totalorder %s113, %s127
      %p129 = scmp.eq.s32.totalorder %s26, 0
      %p130 = por %p128, %p129
      %s132 = sadd.s32 %s131, 1
      %p135 = scmp.eq.s32.totalorder %s20, 7
      %p136 = scmp.ne.s32.totalorder %s131, %s133
      %p137 = scmp.eq.s32.totalorder %s20, 0
      %p138 = por %p136, %p137
      %p139 = scmp.ne.s32.totalorder %s131, %s133
      %p140 = scmp.eq.s32.totalorder %s25, 7
      %p141 = por %p139, %p140
      %p142 = scmp.ne.s32.totalorder %s133, %s134
      %p143 = scmp.eq.s32.totalorder %s25, 0
      %p144 = por %p142, %p143
      %p145 = scmp.ne.s32.totalorder %s133, %s134
      %p146 = scmp.eq.s32.totalorder %s26, 7
      %p147 = por %p145, %p146
      %p149 = scmp.ne.s32.totalorder %s134, %s148
      %p150 = scmp.eq.s32.totalorder %s26, 0
      %p151 = por %p149, %p150
      %s153 = sadd.s32 %s152, 1
      %p156 = scmp.eq.s32.totalorder %s20, 7
      %p157 = scmp.ne.s32.totalorder %s152, %s154
      %p158 = scmp.eq.s32.totalorder %s20, 0
      %p159 = por %p157, %p158
      %p160 = scmp.ne.s32.totalorder %s152, %s154
      %p161 = scmp.eq.s32.totalorder %s25, 7
      %p162 = por %p160, %p161
      %p163 = scmp.ne.s32.totalorder %s154, %s155
      %p164 = scmp.eq.s32.totalorder %s25, 0
      %p165 = por %p163, %p164
      %p166 = scmp.ne.s32.totalorder %s154, %s155
      %p167 = scmp.eq.s32.totalorder %s26, 7
      %p168 = por %p166, %p167
      %p170 = scmp.ne.s32.totalorder %s155, %s169
      %p171 = scmp.eq.s32.totalorder %s26, 0
      %p172 = por %p170, %p171
      %s174 = sadd.s32 %s173, 1
      %p177 = scmp.eq.s32.totalorder %s20, 7
      %p178 = scmp.ne.s32.totalorder %s173, %s175
      %p179 = scmp.eq.s32.totalorder %s20, 0
      %p180 = por %p178, %p179
      %p181 = scmp.ne.s32.totalorder %s173, %s175
      %p182 = scmp.eq.s32.totalorder %s25, 7
      %p183 = por %p181, %p182
      %p184 = scmp.ne.s32.totalorder %s175, %s176
      %p185 = scmp.eq.s32.totalorder %s25, 0
      %p186 = por %p184, %p185
      %p187 = scmp.ne.s32.totalorder %s175, %s176
      %p188 = scmp.eq.s32.totalorder %s26, 7
      %p189 = por %p187, %p188
      %p191 = scmp.ne.s32.totalorder %s176, %s190
      %p192 = scmp.eq.s32.totalorder %s26, 0
      %p193 = por %p191, %p192
      %s194 = ssub.s32 %s27, %s39
      %p195 = scmp.eq.s32.totalorder %s194, 0
      %s197 = sadd.s32 %s196, 1
      %s198 = scalar_select %p195, %s196, %s197
      %p201 = pneg %p195
      %p202 = scmp.eq.s32.totalorder %s20, 7
      %p203 = por %p201, %p202
      %p204 = scmp.ne.s32.totalorder %s196, %s199
      %p205 = scmp.eq.s32.totalorder %s20, 0
      %p206 = por %p204, %p205
      %p207 = scmp.ne.s32.totalorder %s196, %s199
      %p208 = scmp.eq.s32.totalorder %s25, 7
      %p209 = por %p207, %p208
      %p210 = scmp.ne.s32.totalorder %s199, %s200
      %p211 = scmp.eq.s32.totalorder %s25, 0
      %p212 = por %p210, %p211
      %p213 = scmp.ne.s32.totalorder %s199, %s200
      %p214 = scmp.eq.s32.totalorder %s26, 7
      %p215 = por %p213, %p214
      %p217 = scmp.ne.s32.totalorder %s200, %s216
      %p218 = scmp.eq.s32.totalorder %s26, 0
      %p219 = por %p217, %p218
      %p220 = scmp.le.s32.totalorder 1, %s20
      %p221 = scmp.lt.s32.totalorder %s20, 9
      %p222 = pnand %p220, %p221
      %p223 = pneg %p222
      // Predicated region
      $region9: #{tpu_custom_call.1} parent=5 // pred_check
        _
      $region10: #{tpu_custom_call.1} parent=5 // pred_check_branch
        %225 = sbr.rel (%p222) target = $region12
      $region11: #{tpu_custom_call.1} parent=5 // pred_region
        %s226 = ssub.s32 %s20, 1
        // Predicated region
        $region13: #{tpu_custom_call.1} parent=11 // pred_check
          %p227 = pneg %p81
        $region14: #{tpu_custom_call.1} parent=11 // pred_check_branch
          %229 = sbr.rel (%p227) target = $region16
        $region15: #{tpu_custom_call.1} parent=11 // pred_region
          _
        $region16: #{tpu_custom_call.1} parent=11 // pred_fallthru
          _
        // Predicated region
        $region17: #{tpu_custom_call.1} parent=11 // pred_check
          %p230 = pneg %p102
        $region18: #{tpu_custom_call.1} parent=11 // pred_check_branch
          %232 = sbr.rel (%p230) target = $region20
        $region19: #{tpu_custom_call.1} parent=11 // pred_region
          %s234 = ssub.s32 32, 32
          %235 = vsyncadd [#allocation9], %s234
          %s237 = sshll.u32 [#allocation8], 4
          %s238 = int_to_ptr.vmem [resolvable:$true] %s237
          %240 = dma.hbm_to_vmem [thread:$0]  %s2, 32, %s238, [#allocation9]
        $region20: #{tpu_custom_call.1} parent=11 // pred_fallthru
          _
        // Predicated region
        $region21: #{tpu_custom_call.1} parent=11 // pred_check
          %p241 = pneg %p123
        $region22: #{tpu_custom_call.1} parent=11 // pred_check_branch
          %243 = sbr.rel (%p241) target = $region24
        $region23: #{tpu_custom_call.1} parent=11 // pred_region
          _
        $region24: #{tpu_custom_call.1} parent=11 // pred_fallthru
          _
        // Predicated region
        $region25: #{tpu_custom_call.1} parent=11 // pred_check
          %p244 = pneg %p144
        $region26: #{tpu_custom_call.1} parent=11 // pred_check_branch
          %246 = sbr.rel (%p244) target = $region28
        $region27: #{tpu_custom_call.1} parent=11 // pred_region
          _
        $region28: #{tpu_custom_call.1} parent=11 // pred_fallthru
          _
        // Predicated region
        $region29: #{tpu_custom_call.1} parent=11 // pred_check
          %p247 = pneg %p165
        $region30: #{tpu_custom_call.1} parent=11 // pred_check_branch
          %249 = sbr.rel (%p247) target = $region32
        $region31: #{tpu_custom_call.1} parent=11 // pred_region
          %s251 = ssub.s32 2048, 2048
          %252 = vsyncadd [#allocation9], %s251
          %s253 = sshll.u32 [#allocation10], 4
          %s254 = int_to_ptr.vmem [resolvable:$true] %s253
          %259 = dma.hbm_to_vmem [thread:$0]  %s5, 2048, %s254, [#allocation9], 128, 128, 8
        $region32: #{tpu_custom_call.1} parent=11 // pred_fallthru
          _
        // Predicated region
        $region33: #{tpu_custom_call.1} parent=11 // pred_check
          %p260 = pneg %p186
        $region34: #{tpu_custom_call.1} parent=11 // pred_check_branch
          %262 = sbr.rel (%p260) target = $region36
        $region35: #{tpu_custom_call.1} parent=11 // pred_region
          _
        $region36: #{tpu_custom_call.1} parent=11 // pred_fallthru
          _
      $region12: #{tpu_custom_call.1} parent=5 // pred_fallthru
        _
      %p263 = scmp.lt.s32.totalorder %s20, 8
      // Predicated region
      $region37: #{tpu_custom_call.1} parent=5 // pred_check
        %p264 = pneg %p263
      $region38: #{tpu_custom_call.1} parent=5 // pred_check_branch
        %266 = sbr.rel (%p264) target = $region40
      $region39: #{tpu_custom_call.1} parent=5 // pred_region
        // Predicated region
        $region41: #{tpu_custom_call.1} parent=39 // pred_check
          %p267 = pneg %p54
        $region42: #{tpu_custom_call.1} parent=39 // pred_check_branch
          %269 = sbr.rel (%p267) target = $region44
        $region43: #{tpu_custom_call.1} parent=39 // pred_region
          %s270 = sand.u32 %s44, 1
          %s271 = scalar_lea.sflag [#allocation6], %s270
          %s272 = sand.u32 %s44, 1
          %s273 = smul.addr %s272, 64
          %s274 = scalar_lea.vmem [#allocation5], %s273
          %s275 = smul.u32 8, %s28
          %s277 = ssub.s32 1024, 1024
          %278 = vsyncadd %s271, %s277
          %s279 = smul.addr %s275, 4
          %s280 = sadd.s32 %s27, %s279
          %s281 = smul.addr %s280, 128
          %s282 = scalar_lea.hbm %s0, %s281
          %s283 = sshll.u32 %s274, 4
          %s284 = int_to_ptr.vmem [resolvable:$true] %s283
          %289 = dma.hbm_to_vmem [thread:$0]  %s282, 1024, %s284, %s271, 512, 128, 8
        $region44: #{tpu_custom_call.1} parent=39 // pred_fallthru
          _
      $region40: #{tpu_custom_call.1} parent=5 // pred_fallthru
        _
      %p290 = scmp.le.s32.totalorder 1, %s20
      %p291 = scmp.lt.s32.totalorder %s20, 9
      %p292 = pnand %p290, %p291
      %p293 = pneg %p292
      // Predicated region
      $region45: #{tpu_custom_call.1} parent=5 // pred_check
        _
      $region46: #{tpu_custom_call.1} parent=5 // pred_check_branch
        %295 = sbr.rel (%p292) target = $region48
      $region47: #{tpu_custom_call.1} parent=5 // pred_region
        %s296 = ssub.s32 %s20, 1
        %s297 = sand.u32 %s47, 1
        %s298 = scalar_lea.sflag [#allocation6], %s297
        %s299 = sand.u32 %s47, 1
        %s300 = smul.addr %s299, 64
        %s301 = scalar_lea.vmem [#allocation5], %s300
        // Predicated region
        $region49: #{tpu_custom_call.1} parent=47 // pred_check
          %p302 = pneg %p60
        $region50: #{tpu_custom_call.1} parent=47 // pred_check_branch
          %304 = sbr.rel (%p302) target = $region52
        $region51: #{tpu_custom_call.1} parent=47 // pred_region
          %305 = dma.done %s298, 1024
        $region52: #{tpu_custom_call.1} parent=47 // pred_fallthru
          _
        // Predicated region
        $region53: #{tpu_custom_call.1} parent=47 // pred_check
          %p306 = pneg %p102
        $region54: #{tpu_custom_call.1} parent=47 // pred_check_branch
          %308 = sbr.rel (%p306) target = $region56
        $region55: #{tpu_custom_call.1} parent=47 // pred_region
          %309 = dma.done [#allocation9], 32
        $region56: #{tpu_custom_call.1} parent=47 // pred_fallthru
          _
        // Predicated region
        $region57: #{tpu_custom_call.1} parent=47 // pred_check
          %p310 = pneg %p165
        $region58: #{tpu_custom_call.1} parent=47 // pred_check_branch
          %312 = sbr.rel (%p310) target = $region60
        $region59: #{tpu_custom_call.1} parent=47 // pred_region
          %313 = dma.done [#allocation9], 2048
        $region60: #{tpu_custom_call.1} parent=47 // pred_fallthru
          _
        %s314 = sand.u32 %s47, 1
        %s315 = scalar_lea.sflag [#allocation6], %s314
        %s316 = sand.u32 %s47, 1
        %s317 = smul.addr %s316, 64
        %s318 = scalar_lea.vmem [#allocation5], %s317
        %p319 = pneg %p60
        %p320 = pneg %p57
        %p321 = pneg %p81
        %p322 = pneg %p78
        %p323 = pneg %p102
        %p324 = pneg %p99
        %p325 = pneg %p123
        %p326 = pneg %p120
        %p327 = pneg %p144
        %p328 = pneg %p141
        %p329 = pneg %p165
        %p330 = pneg %p162
        %p331 = pneg %p186
        %p332 = pneg %p183
        %p333 = pneg %p212
        %p334 = pneg %p209
        %s335 = sand.u32 %s199, 1
        %s336 = scalar_lea.sflag [#allocation7], %s335
        %s337 = sand.u32 %s199, 1
        %s338 = smul.addr %s337, 8
        %s339 = scalar_lea.vmem [#allocation11], %s338
        %s340 = smul.u32 8, %s30
        %p341 = scmp.eq.s32.totalorder %s30, 0
        // Predicated region
        $region61: #{tpu_custom_call.1} parent=47 // pred_check
          %p342 = pneg %p341
        $region62: #{tpu_custom_call.1} parent=47 // pred_check_branch
          %344 = sbr.rel (%p342) target = $region64
        $region63: #{tpu_custom_call.1} parent=47 // pred_region
          %vm345 = vcmask 31744
          %346 = vst.msk [vmem:[#allocation2] sm:$0xff] %vm345, -inf
          %347 = vst.msk [vmem:[#allocation3] sm:$0xff] %vm345, 0.0
          %348 = vst [vmem:[#allocation4] sm:$0xff] 0.0
        $region64: #{tpu_custom_call.1} parent=47 // pred_fallthru
          _
        %v349 = vld [vmem:[%s301] sm:$0xff]
        %v350 = vld [vmem:[%s301 + $0x8] sm:$0xff]
        %v351 = vld [vmem:[%s301 + $0x10] sm:$0xff]
        %v352 = vld [vmem:[%s301 + $0x18] sm:$0xff]
        %v353 = vld [vmem:[%s301 + $0x20] sm:$0xff]
        %v354 = vld [vmem:[%s301 + $0x28] sm:$0xff]
        %v355 = vld [vmem:[%s301 + $0x30] sm:$0xff]
        %v356 = vld [vmem:[%s301 + $0x38] sm:$0xff]
        %v357 = vld [vmem:[%s1] sm:$0xff]
        %v358 = vld [vmem:[%s1 + $0x8] sm:$0xff]
        %v359 = vld [vmem:[%s1 + $0x10] sm:$0xff]
        %v360 = vld [vmem:[%s1 + $0x18] sm:$0xff]
        %v361 = vld [vmem:[%s1 + $0x20] sm:$0xff]
        %v362 = vld [vmem:[%s1 + $0x28] sm:$0xff]
        %v363 = vld [vmem:[%s1 + $0x30] sm:$0xff]
        %v364 = vld [vmem:[%s1 + $0x38] sm:$0xff]
        %v365 = vld [vmem:[%s1 + $0x40] sm:$0xff]
        %v366 = vld [vmem:[%s1 + $0x48] sm:$0xff]
        %v367 = vld [vmem:[%s1 + $0x50] sm:$0xff]
        %v368 = vld [vmem:[%s1 + $0x58] sm:$0xff]
        %v369 = vld [vmem:[%s1 + $0x60] sm:$0xff]
        %v370 = vld [vmem:[%s1 + $0x68] sm:$0xff]
        %v371 = vld [vmem:[%s1 + $0x70] sm:$0xff]
        %v372 = vld [vmem:[%s1 + $0x78] sm:$0xff]
        %v373 = vld [vmem:[#allocation8] sm:$0x3]
        %v375 = vlaneseq
        %v376 = vshrl.u32 %v375, 7
        %v377 = vsub.s32 0, %v376
        %v378 = vrot.slane %v373, %v377
        %v379 = vlaneseq
        %v380 = vshrl.u32 %v379, 7
        %v381 = vsub.s32 1, %v380
        %v382 = vrot.slane %v373, %v381
        %vm385 = vcmask 523264
        %v387 = vsel %vm385, %v349, 0
        %v390 = vsel %vm385, %v350, 0
        %v393 = vsel %vm385, %v351, 0
        %v396 = vsel %vm385, %v352, 0
        %v399 = vsel %vm385, %v353, 0
        %v402 = vsel %vm385, %v354, 0
        %v405 = vsel %vm385, %v355, 0
        %v408 = vsel %vm385, %v356, 0
        %410 = vmatprep.subr.mxu0 0.0
        %411 = vmatpush1.msra.mxu0 0.0
        %412 = vmatprep.subr.mxu0 0.0
        %413 = vmatpush1.msra.mxu0 0.0
        %414 = vmatprep.subr.mxu0 0.0
        %415 = vmatpush1.msra.mxu0 0.0
        %416 = vmatprep.subr.mxu0 0.0
        %417 = vmatpush1.msra.mxu0 0.0
        %418 = vmatprep.subr.mxu0 0.0
        %419 = vmatpush1.msra.mxu0 0.0
        %420 = vmatprep.subr.mxu0 0.0
        %421 = vmatpush1.msra.mxu0 0.0
        %422 = vmatprep.subr.mxu0 0.0
        %423 = vmatpush1.msra.mxu0 0.0
        %424 = vmatprep.subr.mxu0 0.0
        %425 = vmatpush1.msra.mxu0 0.0
        %426 = vmatprep.subr.mxu0 %v372
        %427 = vmatpush1.msra.mxu0 %v371
        %428 = vmatprep.subr.mxu0 %v370
        %429 = vmatpush1.msra.mxu0 %v369
        %430 = vmatprep.subr.mxu0 %v368
        %431 = vmatpush1.msra.mxu0 %v367
        %432 = vmatprep.subr.mxu0 %v366
        %433 = vmatpush1.msra.mxu0 %v365
        %434 = vmatprep.subr.mxu0 %v364
        %435 = vmatpush1.msra.mxu0 %v363
        %436 = vmatprep.subr.mxu0 %v362
        %437 = vmatpush1.msra.mxu0 %v361
        %438 = vmatprep.subr.mxu0 %v360
        %439 = vmatpush1.msra.mxu0 %v359
        %440 = vmatprep.subr.mxu0 %v358
        %441 = vmatpush1.msra.mxu0 %v357
        %442 = vmatprep.subr.mxu0 0.0
        %443 = vmatpush2.msra.mxu0 0.0
        %444 = vmatprep.subr.mxu0 0.0
        %445 = vmatpush2.msra.mxu0 0.0
        %446 = vmatprep.subr.mxu0 0.0
        %447 = vmatpush2.msra.mxu0 0.0
        %448 = vmatprep.subr.mxu0 0.0
        %449 = vmatpush2.msra.mxu0 0.0
        %450 = vmatprep.subr.mxu0 0.0
        %451 = vmatpush2.msra.mxu0 0.0
        %452 = vmatprep.subr.mxu0 0.0
        %453 = vmatpush2.msra.mxu0 0.0
        %454 = vmatprep.subr.mxu0 0.0
        %455 = vmatpush2.msra.mxu0 0.0
        %456 = vmatprep.subr.mxu0 0.0
        %457 = vmatpush2.msra.mxu0 0.0
        %458 = vmatprep.subr.mxu0 0.0
        %459 = vmatpush2.msra.mxu0 0.0
        %460 = vmatprep.subr.mxu0 0.0
        %461 = vmatpush2.msra.mxu0 0.0
        %462 = vmatprep.subr.mxu0 0.0
        %463 = vmatpush2.msra.mxu0 0.0
        %464 = vmatprep.subr.mxu0 0.0
        %465 = vmatpush2.msra.mxu0 0.0
        %466 = vmatprep.subr.mxu0 0.0
        %467 = vmatpush2.msra.mxu0 0.0
        %468 = vmatprep.subr.mxu0 0.0
        %469 = vmatpush2.msra.mxu0 0.0
        %470 = vmatprep.subr.mxu0 0.0
        %471 = vmatpush2.msra.mxu0 0.0
        %472 = vmatprep.subr.mxu0 0.0
        %473 = vmatpush2.msra.mxu0 0.0
        %474 = vmatprep.mubr.f32.mxu0 0.0
        %475 = vmatmul.mubr.f32.gmra.mxu0 %v387
        %v476 = vpop.f32.mrf.mxu0
        %v477 = vadd.f32 %v378, %v476
        %v478 = vpop.f32.mrf.mxu0
        %v479 = vadd.f32 %v382, %v478
        %480 = vmatprep.mubr.f32.mxu0 0.0
        %481 = vmatmul.mubr.f32.gmra.mxu0 %v390
        %v482 = vpop.f32.mrf.mxu0
        %v483 = vadd.f32 %v378, %v482
        %v484 = vpop.f32.mrf.mxu0
        %v485 = vadd.f32 %v382, %v484
        %486 = vmatprep.mubr.f32.mxu0 0.0
        %487 = vmatmul.mubr.f32.gmra.mxu0 %v393
        %v488 = vpop.f32.mrf.mxu0
        %v489 = vadd.f32 %v378, %v488
        %v490 = vpop.f32.mrf.mxu0
        %v491 = vadd.f32 %v382, %v490
        %492 = vmatprep.mubr.f32.mxu0 0.0
        %493 = vmatmul.mubr.f32.gmra.mxu0 %v396
        %v494 = vpop.f32.mrf.mxu0
        %v495 = vadd.f32 %v378, %v494
        %v496 = vpop.f32.mrf.mxu0
        %v497 = vadd.f32 %v382, %v496
        %498 = vmatprep.mubr.f32.mxu0 0.0
        %499 = vmatmul.mubr.f32.gmra.mxu0 %v399
        %v500 = vpop.f32.mrf.mxu0
        %v501 = vadd.f32 %v378, %v500
        %v502 = vpop.f32.mrf.mxu0
        %v503 = vadd.f32 %v382, %v502
        %504 = vmatprep.mubr.f32.mxu0 0.0
        %505 = vmatmul.mubr.f32.gmra.mxu0 %v402
        %v506 = vpop.f32.mrf.mxu0
        %v507 = vadd.f32 %v378, %v506
        %v508 = vpop.f32.mrf.mxu0
        %v509 = vadd.f32 %v382, %v508
        %510 = vmatprep.mubr.f32.mxu0 0.0
        %511 = vmatmul.mubr.f32.gmra.mxu0 %v405
        %v512 = vpop.f32.mrf.mxu0
        %v513 = vadd.f32 %v378, %v512
        %v514 = vpop.f32.mrf.mxu0
        %v515 = vadd.f32 %v382, %v514
        %516 = vmatprep.mubr.f32.mxu0 0.0
        %517 = vmatmul.mubr.f32.gmra.mxu0 %v408
        %v518 = vpop.f32.mrf.mxu0
        %v519 = vadd.f32 %v378, %v518
        %v520 = vpop.f32.mrf.mxu0
        %v521 = vadd.f32 %v382, %v520
        %522 = vdwg.mxu0
        %v523 = vld [vmem:[%s3] sm:$0xff]
        %v524 = vld [vmem:[%s3 + $0x8] sm:$0xff]
        %v525 = vld [vmem:[%s3 + $0x10] sm:$0xff]
        %v526 = vld [vmem:[%s3 + $0x18] sm:$0xff]
        %v527 = vld [vmem:[%s3 + $0x20] sm:$0xff]
        %v528 = vld [vmem:[%s3 + $0x28] sm:$0xff]
        %v529 = vld [vmem:[%s3 + $0x30] sm:$0xff]
        %v530 = vld [vmem:[%s3 + $0x38] sm:$0xff]
        %v531 = vld [vmem:[%s3 + $0x40] sm:$0xff]
        %v532 = vld [vmem:[%s3 + $0x48] sm:$0xff]
        %v533 = vld [vmem:[%s3 + $0x50] sm:$0xff]
        %v534 = vld [vmem:[%s3 + $0x58] sm:$0xff]
        %v535 = vld [vmem:[%s3 + $0x60] sm:$0xff]
        %v536 = vld [vmem:[%s3 + $0x68] sm:$0xff]
        %v537 = vld [vmem:[%s3 + $0x70] sm:$0xff]
        %v538 = vld [vmem:[%s3 + $0x78] sm:$0xff]
        %539 = vmatprep.subr.mxu0 0.0
        %540 = vmatpush1.msra.mxu0 %v538
        %541 = vmatprep.subr.mxu0 0.0
        %542 = vmatpush1.msra.mxu0 %v537
        %543 = vmatprep.subr.mxu0 0.0
        %544 = vmatpush1.msra.mxu0 %v536
        %545 = vmatprep.subr.mxu0 0.0
        %546 = vmatpush1.msra.mxu0 %v535
        %547 = vmatprep.subr.mxu0 0.0
        %548 = vmatpush1.msra.mxu0 %v534
        %549 = vmatprep.subr.mxu0 0.0
        %550 = vmatpush1.msra.mxu0 %v533
        %551 = vmatprep.subr.mxu0 0.0
        %552 = vmatpush1.msra.mxu0 %v532
        %553 = vmatprep.subr.mxu0 0.0
        %554 = vmatpush1.msra.mxu0 %v531
        %555 = vmatprep.subr.mxu0 0.0
        %556 = vmatpush1.msra.mxu0 %v530
        %557 = vmatprep.subr.mxu0 0.0
        %558 = vmatpush1.msra.mxu0 %v529
        %559 = vmatprep.subr.mxu0 0.0
        %560 = vmatpush1.msra.mxu0 %v528
        %561 = vmatprep.subr.mxu0 0.0
        %562 = vmatpush1.msra.mxu0 %v527
        %563 = vmatprep.subr.mxu0 0.0
        %564 = vmatpush1.msra.mxu0 %v526
        %565 = vmatprep.subr.mxu0 0.0
        %566 = vmatpush1.msra.mxu0 %v525
        %567 = vmatprep.subr.mxu0 0.0
        %568 = vmatpush1.msra.mxu0 %v524
        %569 = vmatprep.subr.mxu0 0.0
        %570 = vmatpush1.msra.mxu0 %v523
        %571 = vmatprep.subr.mxu0 0.0
        %572 = vmatpush2.msra.mxu0 0.0
        %573 = vmatprep.subr.mxu0 0.0
        %574 = vmatpush2.msra.mxu0 0.0
        %575 = vmatprep.subr.mxu0 0.0
        %576 = vmatpush2.msra.mxu0 0.0
        %577 = vmatprep.subr.mxu0 0.0
        %578 = vmatpush2.msra.mxu0 0.0
        %579 = vmatprep.subr.mxu0 0.0
        %580 = vmatpush2.msra.mxu0 0.0
        %581 = vmatprep.subr.mxu0 0.0
        %582 = vmatpush2.msra.mxu0 0.0
        %583 = vmatprep.subr.mxu0 0.0
        %584 = vmatpush2.msra.mxu0 0.0
        %585 = vmatprep.subr.mxu0 0.0
        %586 = vmatpush2.msra.mxu0 0.0
        %587 = vmatprep.subr.mxu0 0.0
        %588 = vmatpush2.msra.mxu0 0.0
        %589 = vmatprep.subr.mxu0 0.0
        %590 = vmatpush2.msra.mxu0 0.0
        %591 = vmatprep.subr.mxu0 0.0
        %592 = vmatpush2.msra.mxu0 0.0
        %593 = vmatprep.subr.mxu0 0.0
        %594 = vmatpush2.msra.mxu0 0.0
        %595 = vmatprep.subr.mxu0 0.0
        %596 = vmatpush2.msra.mxu0 0.0
        %597 = vmatprep.subr.mxu0 0.0
        %598 = vmatpush2.msra.mxu0 0.0
        %599 = vmatprep.subr.mxu0 0.0
        %600 = vmatpush2.msra.mxu0 0.0
        %601 = vmatprep.subr.mxu0 0.0
        %602 = vmatpush2.msra.mxu0 0.0
        %603 = vmatprep.mubr.f32.mxu0 0.0
        %604 = vmatmul.mubr.f32.gmra.mxu0 %v477
        %v605 = vpop.f32.mrf.mxu0
        %v606 = vadd.f32 0.0, %v605
        %v607 = vpop.f32.mrf.mxu0
        %608 = vmatprep.mubr.f32.mxu0 0.0
        %609 = vmatmul.mubr.f32.gmra.mxu0 %v483
        %v610 = vpop.f32.mrf.mxu0
        %v611 = vadd.f32 0.0, %v610
        %v612 = vpop.f32.mrf.mxu0
        %613 = vmatprep.mubr.f32.mxu0 0.0
        %614 = vmatmul.mubr.f32.gmra.mxu0 %v489
        %v615 = vpop.f32.mrf.mxu0
        %v616 = vadd.f32 0.0, %v615
        %v617 = vpop.f32.mrf.mxu0
        %618 = vmatprep.mubr.f32.mxu0 0.0
        %619 = vmatmul.mubr.f32.gmra.mxu0 %v495
        %v620 = vpop.f32.mrf.mxu0
        %v621 = vadd.f32 0.0, %v620
        %v622 = vpop.f32.mrf.mxu0
        %623 = vmatprep.mubr.f32.mxu0 0.0
        %624 = vmatmul.mubr.f32.gmra.mxu0 %v501
        %v625 = vpop.f32.mrf.mxu0
        %v626 = vadd.f32 0.0, %v625
        %v627 = vpop.f32.mrf.mxu0
        %628 = vmatprep.mubr.f32.mxu0 0.0
        %629 = vmatmul.mubr.f32.gmra.mxu0 %v507
        %v630 = vpop.f32.mrf.mxu0
        %v631 = vadd.f32 0.0, %v630
        %v632 = vpop.f32.mrf.mxu0
        %633 = vmatprep.mubr.f32.mxu0 0.0
        %634 = vmatmul.mubr.f32.gmra.mxu0 %v513
        %v635 = vpop.f32.mrf.mxu0
        %v636 = vadd.f32 0.0, %v635
        %v637 = vpop.f32.mrf.mxu0
        %638 = vmatprep.mubr.f32.mxu0 0.0
        %639 = vmatmul.mubr.f32.gmra.mxu0 %v519
        %v640 = vpop.f32.mrf.mxu0
        %v641 = vadd.f32 0.0, %v640
        %v642 = vpop.f32.mrf.mxu0
        %643 = vdwg.mxu0
        %v644 = vld [vmem:[#allocation2] sm:$0xff]
        %vm645 = vcmask 31744
        %v646 = vsel %vm645, %v606, -inf
        %v647 = vsel %vm645, %v611, -inf
        %v648 = vsel %vm645, %v616, -inf
        %v649 = vsel %vm645, %v621, -inf
        %v650 = vsel %vm645, %v626, -inf
        %v651 = vmax.f32 %v646, %v650
        %v652 = vsel %vm645, %v631, -inf
        %v653 = vmax.f32 %v647, %v652
        %v654 = vsel %vm645, %v636, -inf
        %v655 = vmax.f32 %v648, %v654
        %v656 = vsel %vm645, %v641, -inf
        %v657 = vmax.f32 %v649, %v656
        %v658 = vmax.f32 %v651, %v653
        %v659 = vmax.f32 %v655, %v657
        %v660 = vmax.f32 %v658, %v659
        %v661 = vmax.f32 %v644, %v660
        %v662 = vsub.f32 %v644, %v661
        %v663 = vmul.f32 %v662, 1.442695
        %v664 = vpow.pop %v663
        %v665 = vsub.f32 %v606, %v661
        %v666 = vsub.f32 %v611, %v661
        %v667 = vsub.f32 %v616, %v661
        %v668 = vsub.f32 %v621, %v661
        %v669 = vsub.f32 %v626, %v661
        %v670 = vsub.f32 %v631, %v661
        %v671 = vsub.f32 %v636, %v661
        %v672 = vsub.f32 %v641, %v661
        %v673 = vmul.f32 %v665, 1.442695
        %v674 = vpow.pop %v673
        %v675 = vmul.f32 %v666, 1.442695
        %v676 = vpow.pop %v675
        %v677 = vmul.f32 %v667, 1.442695
        %v678 = vpow.pop %v677
        %v679 = vmul.f32 %v668, 1.442695
        %v680 = vpow.pop %v679
        %v681 = vmul.f32 %v669, 1.442695
        %v682 = vpow.pop %v681
        %v683 = vmul.f32 %v670, 1.442695
        %v684 = vpow.pop %v683
        %v685 = vmul.f32 %v671, 1.442695
        %v686 = vpow.pop %v685
        %v687 = vmul.f32 %v672, 1.442695
        %v688 = vpow.pop %v687
        %v689 = vld [vmem:[#allocation3] sm:$0xff]
        %v690 = vmul.f32 %v664, %v689
        %v691 = vsel %vm645, %v674, 0.0
        %v692 = vsel %vm645, %v676, 0.0
        %v693 = vadd.f32 %v691, %v692
        %v694 = vsel %vm645, %v678, 0.0
        %v695 = vadd.f32 %v693, %v694
        %v696 = vsel %vm645, %v680, 0.0
        %v697 = vadd.f32 %v695, %v696
        %v698 = vsel %vm645, %v682, 0.0
        %v699 = vadd.f32 %v697, %v698
        %v700 = vsel %vm645, %v684, 0.0
        %v701 = vadd.f32 %v699, %v700
        %v702 = vsel %vm645, %v686, 0.0
        %v703 = vadd.f32 %v701, %v702
        %v704 = vsel %vm645, %v688, 0.0
        %v705 = vadd.f32 %v703, %v704
        %v706 = vadd.f32 %v690, %v705
        %707 = vst.msk [vmem:[#allocation3] sm:$0xff] %vm645, %v706
        %v708 = vld [vmem:[%s4] sm:$0xf]
        %v710 = vsel %vm645, %v674, 0
        %v713 = vsel %vm645, %v676, 0
        %v716 = vsel %vm645, %v678, 0
        %v719 = vsel %vm645, %v680, 0
        %v722 = vsel %vm645, %v682, 0
        %v725 = vsel %vm645, %v684, 0
        %v728 = vsel %vm645, %v686, 0
        %v731 = vsel %vm645, %v688, 0
        %vm733 = vcmask 1043456
        %v735 = vsel %vm733, %v708, 0
        %737 = vmatprep.subr.mxu0 0.0
        %738 = vmatpush1.msra.mxu0 0.0
        %739 = vmatprep.subr.mxu0 0.0
        %740 = vmatpush1.msra.mxu0 0.0
        %741 = vmatprep.subr.mxu0 0.0
        %742 = vmatpush1.msra.mxu0 0.0
        %743 = vmatprep.subr.mxu0 0.0
        %744 = vmatpush1.msra.mxu0 0.0
        %745 = vmatprep.subr.mxu0 0.0
        %746 = vmatpush1.msra.mxu0 0.0
        %747 = vmatprep.subr.mxu0 0.0
        %748 = vmatpush1.msra.mxu0 0.0
        %749 = vmatprep.subr.mxu0 0.0
        %750 = vmatpush1.msra.mxu0 0.0
        %751 = vmatprep.subr.mxu0 0.0
        %752 = vmatpush1.msra.mxu0 0.0
        %753 = vmatprep.subr.mxu0 0.0
        %754 = vmatpush1.msra.mxu0 0.0
        %755 = vmatprep.subr.mxu0 0.0
        %756 = vmatpush1.msra.mxu0 0.0
        %757 = vmatprep.subr.mxu0 0.0
        %758 = vmatpush1.msra.mxu0 0.0
        %759 = vmatprep.subr.mxu0 0.0
        %760 = vmatpush1.msra.mxu0 0.0
        %761 = vmatprep.subr.mxu0 0.0
        %762 = vmatpush1.msra.mxu0 0.0
        %763 = vmatprep.subr.mxu0 0.0
        %764 = vmatpush1.msra.mxu0 0.0
        %765 = vmatprep.subr.mxu0 0.0
        %766 = vmatpush1.msra.mxu0 0.0
        %767 = vmatprep.subr.mxu0 0.0
        %768 = vmatpush1.msra.mxu0 %v735
        %769 = vmatprep.subr.mxu0 0.0
        %770 = vmatpush2.msra.mxu0 0.0
        %771 = vmatprep.subr.mxu0 0.0
        %772 = vmatpush2.msra.mxu0 0.0
        %773 = vmatprep.subr.mxu0 0.0
        %774 = vmatpush2.msra.mxu0 0.0
        %775 = vmatprep.subr.mxu0 0.0
        %776 = vmatpush2.msra.mxu0 0.0
        %777 = vmatprep.subr.mxu0 0.0
        %778 = vmatpush2.msra.mxu0 0.0
        %779 = vmatprep.subr.mxu0 0.0
        %780 = vmatpush2.msra.mxu0 0.0
        %781 = vmatprep.subr.mxu0 0.0
        %782 = vmatpush2.msra.mxu0 0.0
        %783 = vmatprep.subr.mxu0 0.0
        %784 = vmatpush2.msra.mxu0 0.0
        %785 = vmatprep.subr.mxu0 0.0
        %786 = vmatpush2.msra.mxu0 0.0
        %787 = vmatprep.subr.mxu0 0.0
        %788 = vmatpush2.msra.mxu0 0.0
        %789 = vmatprep.subr.mxu0 0.0
        %790 = vmatpush2.msra.mxu0 0.0
        %791 = vmatprep.subr.mxu0 0.0
        %792 = vmatpush2.msra.mxu0 0.0
        %793 = vmatprep.subr.mxu0 0.0
        %794 = vmatpush2.msra.mxu0 0.0
        %795 = vmatprep.subr.mxu0 0.0
        %796 = vmatpush2.msra.mxu0 0.0
        %797 = vmatprep.subr.mxu0 0.0
        %798 = vmatpush2.msra.mxu0 0.0
        %799 = vmatprep.subr.mxu0 0.0
        %800 = vmatpush2.msra.mxu0 0.0
        %801 = vmatprep.mubr.f32.mxu0 0.0
        %802 = vmatmul.mubr.f32.gmra.mxu0 %v710
        %v803 = vpop.f32.mrf.mxu0
        %v804 = vadd.f32 0.0, %v803
        %v805 = vpop.f32.mrf.mxu0
        %806 = vmatprep.mubr.f32.mxu0 0.0
        %807 = vmatmul.mubr.f32.gmra.mxu0 %v713
        %v808 = vpop.f32.mrf.mxu0
        %v809 = vadd.f32 0.0, %v808
        %v810 = vpop.f32.mrf.mxu0
        %811 = vmatprep.mubr.f32.mxu0 0.0
        %812 = vmatmul.mubr.f32.gmra.mxu0 %v716
        %v813 = vpop.f32.mrf.mxu0
        %v814 = vadd.f32 0.0, %v813
        %v815 = vpop.f32.mrf.mxu0
        %816 = vmatprep.mubr.f32.mxu0 0.0
        %817 = vmatmul.mubr.f32.gmra.mxu0 %v719
        %v818 = vpop.f32.mrf.mxu0
        %v819 = vadd.f32 0.0, %v818
        %v820 = vpop.f32.mrf.mxu0
        %821 = vmatprep.mubr.f32.mxu0 0.0
        %822 = vmatmul.mubr.f32.gmra.mxu0 %v722
        %v823 = vpop.f32.mrf.mxu0
        %v824 = vadd.f32 0.0, %v823
        %v825 = vpop.f32.mrf.mxu0
        %826 = vmatprep.mubr.f32.mxu0 0.0
        %827 = vmatmul.mubr.f32.gmra.mxu0 %v725
        %v828 = vpop.f32.mrf.mxu0
        %v829 = vadd.f32 0.0, %v828
        %v830 = vpop.f32.mrf.mxu0
        %831 = vmatprep.mubr.f32.mxu0 0.0
        %832 = vmatmul.mubr.f32.gmra.mxu0 %v728
        %v833 = vpop.f32.mrf.mxu0
        %v834 = vadd.f32 0.0, %v833
        %v835 = vpop.f32.mrf.mxu0
        %836 = vmatprep.mubr.f32.mxu0 0.0
        %837 = vmatmul.mubr.f32.gmra.mxu0 %v731
        %v838 = vpop.f32.mrf.mxu0
        %v839 = vadd.f32 0.0, %v838
        %v840 = vpop.f32.mrf.mxu0
        %841 = vdwg.mxu0
        %v842 = vmul.f32 %v804, %v479
        %v843 = vmul.f32 %v809, %v485
        %v844 = vmul.f32 %v814, %v491
        %v845 = vmul.f32 %v819, %v497
        %v846 = vmul.f32 %v824, %v503
        %v847 = vmul.f32 %v829, %v509
        %v848 = vmul.f32 %v834, %v515
        %v849 = vmul.f32 %v839, %v521
        %v850 = vadd.f32 %v842, %v843
        %v851 = vadd.f32 %v850, %v844
        %v852 = vadd.f32 %v851, %v845
        %v853 = vadd.f32 %v852, %v846
        %v854 = vadd.f32 %v853, %v847
        %v855 = vadd.f32 %v854, %v848
        %v856 = vadd.f32 %v855, %v849
        %v858 = vsel %vm645, %v664, 0
        %860 = vmatprep.subr.mxu0 0.0
        %861 = vmatpush1.msra.mxu0 0.0
        %862 = vmatprep.subr.mxu0 0.0
        %863 = vmatpush1.msra.mxu0 0.0
        %864 = vmatprep.subr.mxu0 0.0
        %865 = vmatpush1.msra.mxu0 0.0
        %866 = vmatprep.subr.mxu0 0.0
        %867 = vmatpush1.msra.mxu0 0.0
        %868 = vmatprep.subr.mxu0 0.0
        %869 = vmatpush1.msra.mxu0 0.0
        %870 = vmatprep.subr.mxu0 0.0
        %871 = vmatpush1.msra.mxu0 0.0
        %872 = vmatprep.subr.mxu0 0.0
        %873 = vmatpush1.msra.mxu0 0.0
        %874 = vmatprep.subr.mxu0 0.0
        %875 = vmatpush1.msra.mxu0 0.0
        %876 = vmatprep.subr.mxu0 0.0
        %877 = vmatpush1.msra.mxu0 0.0
        %878 = vmatprep.subr.mxu0 0.0
        %879 = vmatpush1.msra.mxu0 0.0
        %880 = vmatprep.subr.mxu0 0.0
        %881 = vmatpush1.msra.mxu0 0.0
        %882 = vmatprep.subr.mxu0 0.0
        %883 = vmatpush1.msra.mxu0 0.0
        %884 = vmatprep.subr.mxu0 0.0
        %885 = vmatpush1.msra.mxu0 0.0
        %886 = vmatprep.subr.mxu0 0.0
        %887 = vmatpush1.msra.mxu0 0.0
        %888 = vmatprep.subr.mxu0 0.0
        %889 = vmatpush1.msra.mxu0 0.0
        %890 = vmatprep.subr.mxu0 0.0
        %891 = vmatpush1.msra.mxu0 %v735
        %892 = vmatprep.subr.mxu0 0.0
        %893 = vmatpush2.msra.mxu0 0.0
        %894 = vmatprep.subr.mxu0 0.0
        %895 = vmatpush2.msra.mxu0 0.0
        %896 = vmatprep.subr.mxu0 0.0
        %897 = vmatpush2.msra.mxu0 0.0
        %898 = vmatprep.subr.mxu0 0.0
        %899 = vmatpush2.msra.mxu0 0.0
        %900 = vmatprep.subr.mxu0 0.0
        %901 = vmatpush2.msra.mxu0 0.0
        %902 = vmatprep.subr.mxu0 0.0
        %903 = vmatpush2.msra.mxu0 0.0
        %904 = vmatprep.subr.mxu0 0.0
        %905 = vmatpush2.msra.mxu0 0.0
        %906 = vmatprep.subr.mxu0 0.0
        %907 = vmatpush2.msra.mxu0 0.0
        %908 = vmatprep.subr.mxu0 0.0
        %909 = vmatpush2.msra.mxu0 0.0
        %910 = vmatprep.subr.mxu0 0.0
        %911 = vmatpush2.msra.mxu0 0.0
        %912 = vmatprep.subr.mxu0 0.0
        %913 = vmatpush2.msra.mxu0 0.0
        %914 = vmatprep.subr.mxu0 0.0
        %915 = vmatpush2.msra.mxu0 0.0
        %916 = vmatprep.subr.mxu0 0.0
        %917 = vmatpush2.msra.mxu0 0.0
        %918 = vmatprep.subr.mxu0 0.0
        %919 = vmatpush2.msra.mxu0 0.0
        %920 = vmatprep.subr.mxu0 0.0
        %921 = vmatpush2.msra.mxu0 0.0
        %922 = vmatprep.subr.mxu0 0.0
        %923 = vmatpush2.msra.mxu0 0.0
        %924 = vmatprep.mubr.f32.mxu0 0.0
        %925 = vmatmul.mubr.f32.gmra.mxu0 %v858
        %v926 = vpop.f32.mrf.mxu0
        %v927 = vadd.f32 0.0, %v926
        %v928 = vpop.f32.mrf.mxu0
        %929 = vdwg.mxu0
        %v930 = vld [vmem:[#allocation4] sm:$0xff]
        %v931 = vmul.f32 %v927, %v930
        %v932 = vadd.f32 %v931, %v856
        %933 = vst [vmem:[#allocation4] sm:$0xff] %v932
        %934 = vst.msk [vmem:[#allocation2] sm:$0xff] %vm645, %v661
        %p935 = scmp.eq.s32.totalorder %s30, 1
        // Predicated region
        $region65: #{tpu_custom_call.1} parent=47 // pred_check
          %p936 = pneg %p935
        $region66: #{tpu_custom_call.1} parent=47 // pred_check_branch
          %938 = sbr.rel (%p936) target = $region68
        $region67: #{tpu_custom_call.1} parent=47 // pred_region
          %v939 = vld [vmem:[#allocation3] sm:$0xff]
          %v940 = vrcp.pop %v939
          %v941 = vld [vmem:[%s4] sm:$0xf]
          %v943 = vsel %vm645, %v940, 0
          %v946 = vsel %vm733, %v941, 0
          %948 = vmatprep.subr.mxu0 0.0
          %949 = vmatpush1.msra.mxu0 0.0
          %950 = vmatprep.subr.mxu0 0.0
          %951 = vmatpush1.msra.mxu0 0.0
          %952 = vmatprep.subr.mxu0 0.0
          %953 = vmatpush1.msra.mxu0 0.0
          %954 = vmatprep.subr.mxu0 0.0
          %955 = vmatpush1.msra.mxu0 0.0
          %956 = vmatprep.subr.mxu0 0.0
          %957 = vmatpush1.msra.mxu0 0.0
          %958 = vmatprep.subr.mxu0 0.0
          %959 = vmatpush1.msra.mxu0 0.0
          %960 = vmatprep.subr.mxu0 0.0
          %961 = vmatpush1.msra.mxu0 0.0
          %962 = vmatprep.subr.mxu0 0.0
          %963 = vmatpush1.msra.mxu0 0.0
          %964 = vmatprep.subr.mxu0 0.0
          %965 = vmatpush1.msra.mxu0 0.0
          %966 = vmatprep.subr.mxu0 0.0
          %967 = vmatpush1.msra.mxu0 0.0
          %968 = vmatprep.subr.mxu0 0.0
          %969 = vmatpush1.msra.mxu0 0.0
          %970 = vmatprep.subr.mxu0 0.0
          %971 = vmatpush1.msra.mxu0 0.0
          %972 = vmatprep.subr.mxu0 0.0
          %973 = vmatpush1.msra.mxu0 0.0
          %974 = vmatprep.subr.mxu0 0.0
          %975 = vmatpush1.msra.mxu0 0.0
          %976 = vmatprep.subr.mxu0 0.0
          %977 = vmatpush1.msra.mxu0 0.0
          %978 = vmatprep.subr.mxu0 0.0
          %979 = vmatpush1.msra.mxu0 %v946
          %980 = vmatprep.subr.mxu0 0.0
          %981 = vmatpush2.msra.mxu0 0.0
          %982 = vmatprep.subr.mxu0 0.0
          %983 = vmatpush2.msra.mxu0 0.0
          %984 = vmatprep.subr.mxu0 0.0
          %985 = vmatpush2.msra.mxu0 0.0
          %986 = vmatprep.subr.mxu0 0.0
          %987 = vmatpush2.msra.mxu0 0.0
          %988 = vmatprep.subr.mxu0 0.0
          %989 = vmatpush2.msra.mxu0 0.0
          %990 = vmatprep.subr.mxu0 0.0
          %991 = vmatpush2.msra.mxu0 0.0
          %992 = vmatprep.subr.mxu0 0.0
          %993 = vmatpush2.msra.mxu0 0.0
          %994 = vmatprep.subr.mxu0 0.0
          %995 = vmatpush2.msra.mxu0 0.0
          %996 = vmatprep.subr.mxu0 0.0
          %997 = vmatpush2.msra.mxu0 0.0
          %998 = vmatprep.subr.mxu0 0.0
          %999 = vmatpush2.msra.mxu0 0.0
          %1000 = vmatprep.subr.mxu0 0.0
          %1001 = vmatpush2.msra.mxu0 0.0
          %1002 = vmatprep.subr.mxu0 0.0
          %1003 = vmatpush2.msra.mxu0 0.0
          %1004 = vmatprep.subr.mxu0 0.0
          %1005 = vmatpush2.msra.mxu0 0.0
          %1006 = vmatprep.subr.mxu0 0.0
          %1007 = vmatpush2.msra.mxu0 0.0
          %1008 = vmatprep.subr.mxu0 0.0
          %1009 = vmatpush2.msra.mxu0 0.0
          %1010 = vmatprep.subr.mxu0 0.0
          %1011 = vmatpush2.msra.mxu0 0.0
          %1012 = vmatprep.mubr.f32.mxu0 0.0
          %1013 = vmatmul.mubr.f32.gmra.mxu0 %v943
          %v1014 = vpop.f32.mrf.mxu0
          %v1015 = vadd.f32 0.0, %v1014
          %v1016 = vpop.f32.mrf.mxu0
          %1017 = vdwg.mxu0
          %v1018 = vld [vmem:[#allocation4] sm:$0xff]
          %v1019 = vmul.f32 %v1018, %v1015
          %v1020 = vld [vmem:[#allocation10] sm:$0xff]
          %v1021 = vld [vmem:[#allocation10 + $0x8] sm:$0xff]
          %v1022 = vld [vmem:[#allocation10 + $0x10] sm:$0xff]
          %v1023 = vld [vmem:[#allocation10 + $0x18] sm:$0xff]
          %v1024 = vld [vmem:[#allocation10 + $0x20] sm:$0xff]
          %v1025 = vld [vmem:[#allocation10 + $0x28] sm:$0xff]
          %v1026 = vld [vmem:[#allocation10 + $0x30] sm:$0xff]
          %v1027 = vld [vmem:[#allocation10 + $0x38] sm:$0xff]
          %v1028 = vld [vmem:[#allocation10 + $0x40] sm:$0xff]
          %v1029 = vld [vmem:[#allocation10 + $0x48] sm:$0xff]
          %v1030 = vld [vmem:[#allocation10 + $0x50] sm:$0xff]
          %v1031 = vld [vmem:[#allocation10 + $0x58] sm:$0xff]
          %v1032 = vld [vmem:[#allocation10 + $0x60] sm:$0xff]
          %v1033 = vld [vmem:[#allocation10 + $0x68] sm:$0xff]
          %v1034 = vld [vmem:[#allocation10 + $0x70] sm:$0xff]
          %v1035 = vld [vmem:[#allocation10 + $0x78] sm:$0xff]
          %v1036 = vld [vmem:[%s6] sm:$0x1]
          %v1038 = vlaneseq
          %v1039 = vshrl.u32 %v1038, 7
          %v1040 = vsub.s32 0, %v1039
          %v1041 = vrot.slane %v1036, %v1040
          %1043 = vmatprep.subr.mxu0 0.0
          %1044 = vmatpush1.msra.mxu0 %v1035
          %1045 = vmatprep.subr.mxu0 0.0
          %1046 = vmatpush1.msra.mxu0 %v1034
          %1047 = vmatprep.subr.mxu0 0.0
          %1048 = vmatpush1.msra.mxu0 %v1033
          %1049 = vmatprep.subr.mxu0 0.0
          %1050 = vmatpush1.msra.mxu0 %v1032
          %1051 = vmatprep.subr.mxu0 0.0
          %1052 = vmatpush1.msra.mxu0 %v1031
          %1053 = vmatprep.subr.mxu0 0.0
          %1054 = vmatpush1.msra.mxu0 %v1030
          %1055 = vmatprep.subr.mxu0 0.0
          %1056 = vmatpush1.msra.mxu0 %v1029
          %1057 = vmatprep.subr.mxu0 0.0
          %1058 = vmatpush1.msra.mxu0 %v1028
          %1059 = vmatprep.subr.mxu0 0.0
          %1060 = vmatpush1.msra.mxu0 %v1027
          %1061 = vmatprep.subr.mxu0 0.0
          %1062 = vmatpush1.msra.mxu0 %v1026
          %1063 = vmatprep.subr.mxu0 0.0
          %1064 = vmatpush1.msra.mxu0 %v1025
          %1065 = vmatprep.subr.mxu0 0.0
          %1066 = vmatpush1.msra.mxu0 %v1024
          %1067 = vmatprep.subr.mxu0 0.0
          %1068 = vmatpush1.msra.mxu0 %v1023
          %1069 = vmatprep.subr.mxu0 0.0
          %1070 = vmatpush1.msra.mxu0 %v1022
          %1071 = vmatprep.subr.mxu0 0.0
          %1072 = vmatpush1.msra.mxu0 %v1021
          %1073 = vmatprep.subr.mxu0 0.0
          %1074 = vmatpush1.msra.mxu0 %v1020
          %1075 = vmatprep.subr.mxu0 0.0
          %1076 = vmatpush2.msra.mxu0 0.0
          %1077 = vmatprep.subr.mxu0 0.0
          %1078 = vmatpush2.msra.mxu0 0.0
          %1079 = vmatprep.subr.mxu0 0.0
          %1080 = vmatpush2.msra.mxu0 0.0
          %1081 = vmatprep.subr.mxu0 0.0
          %1082 = vmatpush2.msra.mxu0 0.0
          %1083 = vmatprep.subr.mxu0 0.0
          %1084 = vmatpush2.msra.mxu0 0.0
          %1085 = vmatprep.subr.mxu0 0.0
          %1086 = vmatpush2.msra.mxu0 0.0
          %1087 = vmatprep.subr.mxu0 0.0
          %1088 = vmatpush2.msra.mxu0 0.0
          %1089 = vmatprep.subr.mxu0 0.0
          %1090 = vmatpush2.msra.mxu0 0.0
          %1091 = vmatprep.subr.mxu0 0.0
          %1092 = vmatpush2.msra.mxu0 0.0
          %1093 = vmatprep.subr.mxu0 0.0
          %1094 = vmatpush2.msra.mxu0 0.0
          %1095 = vmatprep.subr.mxu0 0.0
          %1096 = vmatpush2.msra.mxu0 0.0
          %1097 = vmatprep.subr.mxu0 0.0
          %1098 = vmatpush2.msra.mxu0 0.0
          %1099 = vmatprep.subr.mxu0 0.0
          %1100 = vmatpush2.msra.mxu0 0.0
          %1101 = vmatprep.subr.mxu0 0.0
          %1102 = vmatpush2.msra.mxu0 0.0
          %1103 = vmatprep.subr.mxu0 0.0
          %1104 = vmatpush2.msra.mxu0 0.0
          %1105 = vmatprep.subr.mxu0 0.0
          %1106 = vmatpush2.msra.mxu0 0.0
          %1107 = vmatprep.mubr.f32.mxu0 0.0
          %1108 = vmatmul.mubr.f32.gmra.mxu0 %v1019
          %v1109 = vpop.f32.mrf.mxu0
          %v1110 = vadd.f32 %v1041, %v1109
          %v1111 = vpop.f32.mrf.mxu0
          %1112 = vdwg.mxu0
          %1113 = vst [vmem:[%s339] sm:$0xff] %v1110
        $region68: #{tpu_custom_call.1} parent=47 // pred_fallthru
          _
        %s1114 = sand.u32 %s199, 1
        %s1115 = scalar_lea.sflag [#allocation7], %s1114
        %s1116 = sand.u32 %s199, 1
        %s1117 = smul.addr %s1116, 8
        %s1118 = scalar_lea.vmem [#allocation11], %s1117
        // Predicated region
        $region69: #{tpu_custom_call.1} parent=47 // pred_check
          %p1119 = pneg %p209
        $region70: #{tpu_custom_call.1} parent=47 // pred_check_branch
          %1121 = sbr.rel (%p1119) target = $region72
        $region71: #{tpu_custom_call.1} parent=47 // pred_region
          %s1123 = ssub.s32 128, 128
          %1124 = vsyncadd %s1115, %s1123
          %s1125 = smul.addr %s29, 128
          %s1126 = scalar_lea.hbm %s7, %s1125
          %s1128 = sshll.u32 %s1118, 4
          %s1129 = int_to_ptr.vmem [resolvable:$true] %s1128
          %1131 = dma.vmem_to_hbm [thread:$0]  %s1129, 128, %s1126, %s1115
        $region72: #{tpu_custom_call.1} parent=47 // pred_fallthru
          _
      $region48: #{tpu_custom_call.1} parent=5 // pred_fallthru
        _
      %p1132 = scmp.le.s32.totalorder 2, %s20
      // Predicated region
      $region73: #{tpu_custom_call.1} parent=5 // pred_check
        %p1133 = pneg %p1132
      $region74: #{tpu_custom_call.1} parent=5 // pred_check_branch
        %1135 = sbr.rel (%p1133) target = $region76
      $region75: #{tpu_custom_call.1} parent=5 // pred_region
        %s1136 = ssub.s32 %s20, 2
        // Predicated region
        $region77: #{tpu_custom_call.1} parent=75 // pred_check
          %p1137 = pneg %p215
        $region78: #{tpu_custom_call.1} parent=75 // pred_check_branch
          %1139 = sbr.rel (%p1137) target = $region80
        $region79: #{tpu_custom_call.1} parent=75 // pred_region
          %s1140 = sand.u32 %s200, 1
          %s1141 = scalar_lea.sflag [#allocation7], %s1140
          %s1142 = sand.u32 %s200, 1
          %s1143 = smul.addr %s1142, 8
          %s1144 = scalar_lea.vmem [#allocation11], %s1143
          %1145 = dma.done %s1141, 128
        $region80: #{tpu_custom_call.1} parent=75 // pred_fallthru
          _
      $region76: #{tpu_custom_call.1} parent=5 // pred_fallthru
        _
    $region6: #{tpu_custom_call.1} parent=1 // loop_footer
      %s24 = sadd.s32 1, %s20
    $region7: #{tpu_custom_call.1} parent=1 // loop_footer_branch
      %19 = sbr.rel target = $region3
    $region8: #{tpu_custom_call.1} parent=1 // loop_exit
      _
    %1146 = vsyncpa [#allocation6], 1
    %s1147 = scalar_lea.sflag [#allocation6], 1
    %1148 = vsyncpa %s1147, 1
    %1149 = vsyncpa [#allocation9], 1
    %1150 = vsyncpa [#allocation7], 1
    %s1151 = scalar_lea.sflag [#allocation7], 1
    %1152 = vsyncpa %s1151, 1

</llo_original>
